<compile_context>
chip_gen: v7x
topology: tpu7x:2x2x1
jax: 0.10.0
libtpu: 0.0.40
codegen_flags: <defaults>
</compile_context>

<pallas_src>
import functools

import jax
import jax.numpy as jnp
import numpy as np
from jax.experimental import pallas as pl
from jax.experimental.pallas import tpu as pltpu


def _round_up(n, m):
    return ((n + m - 1) // m) * m


def _policy_kernel(x_ref, w1_ref, w2_ref, prob_ref, *, action_space):
    compute_dtype = w1_ref.dtype
    x = x_ref[...].astype(compute_dtype)

    # Hidden layer: (TB, S) @ (S, H) -> (TB, H), f32 accumulation on the MXU.
    h = jnp.dot(x, w1_ref[...], preferred_element_type=jnp.float32)
    # TODO(synk): Dropout(p=0.6) is identity in eval mode; training-mode
    # stochastic masking (pltpu.prng_seed / prng_random_bits) is not implemented.
    h = jnp.maximum(h, 0.0)

    # Actor head on the lane-dense padded weight slab: (TB, H) @ (H, A_pad).
    logits = jnp.dot(h.astype(compute_dtype), w2_ref[...],
                     preferred_element_type=jnp.float32)

    # Mask padded action lanes so they carry exactly 0 probability.
    lane = jax.lax.broadcasted_iota(jnp.int32, logits.shape, dimension=1)
    logits = jnp.where(lane < action_space, logits, jnp.float32(-jnp.inf))

    # Numerically stable softmax. Exact divide (denominator is a (TB, 1)
    # column, negligible cost) so rows sum to 1 exactly for the REINFORCE loss.
    m = jnp.max(logits, axis=-1, keepdims=True)
    e = jnp.exp(logits - m)
    denom = jnp.sum(e, axis=-1, keepdims=True)
    prob_ref[...] = (e / denom).astype(prob_ref.dtype)


def prepare_params(w1, w2, *, param_dtype=jnp.float32, lane_pad=128):
    """One-time parameter prep (call once per policy, NOT per forward step).

    w1: (H, S) PyTorch-layout Linear weight.
    w2: (A, H) PyTorch-layout Linear weight.
    param_dtype: jnp.float32 (exact) or jnp.bfloat16 (native MXU dtype, halves
                 weight DMA/VMEM; dots still accumulate in f32).
    Returns (w1_t, w2_pad): (S, H) and lane-dense zero-padded (H, A_pad) with
    A_pad rounded up to a multiple of 128 (lane-dense unmasked stores).
    """
    w1 = jnp.asarray(w1)
    w2 = jnp.asarray(w2)
    A, H = w2.shape
    a_pad = _round_up(max(A, lane_pad), lane_pad)
    w1_t = w1.T.astype(param_dtype)                                   # (S, H)
    w2_pad = jnp.zeros((H, a_pad), param_dtype).at[:, :A].set(
        w2.T.astype(param_dtype))                                     # (H, A_pad)
    return w1_t, w2_pad


_TB_PREF = 512  # preferred batch-tile rows per grid step (rollout batches)


def reinforce_policy_forward_padded(x, w1_t, w2_pad, action_space, *,
                                    out_dtype=jnp.float32):
    """Core forward. Returns the padded (B_pad, A_pad) probability slab.

    Padded action lanes carry exactly 0 probability; padded batch rows are
    don't-care. Consumers should index [:B, :action_space] themselves (or do
    the narrowing inside their own kernel) — slicing here would be a separate
    XLA op that re-reads the whole slab from HBM.
    """
    x = jnp.asarray(x)
    B, S = x.shape
    H = w1_t.shape[1]
    A_pad = w2_pad.shape[1]

    # Sublane alignment: 16 rows when any packed (bf16) operand/output is
    # involved, 8 otherwise.
    sub = 16 if (w1_t.dtype.itemsize < 4 or np.dtype(out_dtype).itemsize < 4) else 8

    # Batch tiling:
    #   * tiny (per-env-step) batches  -> a single <=16-row block;
    #   * rollout-sized batches        -> >=2 blocks (v7x megacore) of roughly
    #     _TB_PREF rows each, amortizing per-grid-step overhead and keeping
    #     every load/store lane- and sublane-dense.
    B_al = _round_up(B, sub)
    if B_al <= 16:
        n_blocks = 1
    else:
        n_blocks = max(2, pl.cdiv(B_al, _TB_PREF))
    TB = _round_up(pl.cdiv(B_al, n_blocks), sub)
    B_pad = TB * n_blocks
    if B_pad != B:
        # Per-env-step callers should hand in an already (8, S)-padded state
        # buffer so this XLA pad op never runs on the hot path.
        x = jnp.pad(x, ((0, B_pad - B), (0, 0)))

    kernel = functools.partial(_policy_kernel, action_space=action_space)

    bytes_accessed = (x.size * x.dtype.itemsize
                      + w1_t.size * w1_t.dtype.itemsize
                      + w2_pad.size * w2_pad.dtype.itemsize
                      + B_pad * A_pad * np.dtype(out_dtype).itemsize)
    cost = pl.CostEstimate(
        flops=2 * B_pad * (S * H + H * A_pad),
        transcendentals=B_pad * A_pad,
        bytes_accessed=bytes_accessed)

    return pl.pallas_call(
        kernel,
        out_shape=jax.ShapeDtypeStruct((B_pad, A_pad), out_dtype),
        grid=(n_blocks,),
        in_specs=[
            pl.BlockSpec((TB, S), lambda i: (i, 0)),       # x batch tile
            pl.BlockSpec((S, H), lambda i: (0, 0)),        # full W1^T
            pl.BlockSpec((H, A_pad), lambda i: (0, 0)),    # full padded W2^T
        ],
        out_specs=pl.BlockSpec((TB, A_pad), lambda i: (i, 0)),
        compiler_params=pltpu.CompilerParams(
            dimension_semantics=("parallel",)),
        cost_estimate=cost,
    )(x, w1_t, w2_pad)


def reinforce_policy_forward(x, w1_t, w2_pad, action_space, *,
                             out_dtype=jnp.float32):
    """Convenience wrapper matching the PyTorch module: returns (B, action_space).

    Note: the [:B, :action_space] slice is an extra XLA op; on hot rollout
    paths prefer reinforce_policy_forward_padded and index in the consumer.
    """
    B = x.shape[0]
    probs = reinforce_policy_forward_padded(x, w1_t, w2_pad, action_space,
                                            out_dtype=out_dtype)
    return probs[:B, :action_space]


def _ref_forward(x, w1, w2):
    h = jnp.maximum(x @ w1.T, 0.0)
    return jax.nn.softmax(h @ w2.T, axis=-1)


if __name__ == "__main__":
    # Cartpole-like sizes: state_space=4, action_space=2, hidden=128, batch=2.
    B, S, H, A = 2, 4, 128, 2

    key = jax.random.PRNGKey(0)
    kx, k1, k2, k3 = jax.random.split(key, 4)

    x = jax.random.normal(kx, (B, S), dtype=jnp.float32)
    # Deterministic synthetic parameters (PyTorch layout: (out, in)).
    w1 = jax.random.normal(k1, (H, S), dtype=jnp.float32) * 0.1
    w2 = jax.random.normal(k2, (A, H), dtype=jnp.float32) * 0.1

    # ---- per-env-step path: B=2, f32 params, exact-match check -------------
    w1_t, w2_pad = prepare_params(w1, w2)
    # Caller maintains an (8, S) buffer so no per-step pad op is emitted.
    x_step = jnp.zeros((8, S), jnp.float32).at[:B].set(x)
    probs_pad = reinforce_policy_forward_padded(x_step, w1_t, w2_pad, A)
    jax.block_until_ready(probs_pad)
    probs = probs_pad[:B, :A]

    ref = _ref_forward(x, w1, w2)
    assert probs.shape == (B, A)
    assert jnp.allclose(probs, ref, atol=1e-4, rtol=1e-4)
    assert jnp.allclose(jnp.sum(probs, axis=-1), 1.0, atol=1e-4)

    # ---- rollout path: multi-block grid, bf16 params + bf16 output ---------
    Br = 40
    xr = jax.random.normal(k3, (Br, S), dtype=jnp.float32)
    w1_bf, w2_bf = prepare_params(w1, w2, param_dtype=jnp.bfloat16)
    probs_r = reinforce_policy_forward(xr, w1_bf, w2_bf, A,
                                       out_dtype=jnp.bfloat16)
    jax.block_until_ready(probs_r)
    ref_r = _ref_forward(xr, w1, w2)
    assert probs_r.shape == (Br, A)
    assert jnp.allclose(probs_r.astype(jnp.float32), ref_r, atol=2e-2, rtol=2e-2)

    print("KERNEL_OK")
</pallas_src>

<mosaic_0001>
module attributes {stable_mosaic.version = 11 : i64} {
  func.func @_policy_kernel(%arg0: i32, %arg1: memref<8x4xf32, #tpu.memory_space<vmem>>, %arg2: memref<4x128xf32, #tpu.memory_space<vmem>>, %arg3: memref<128x128xf32, #tpu.memory_space<vmem>>, %arg4: memref<8x128xf32, #tpu.memory_space<vmem>>) attributes {dimension_semantics = [#tpu.dimension_semantics<parallel>], iteration_bounds = array<i64: 1>, scalar_prefetch = 0 : i64, scratch_operands = 0 : i64, tpu.core_type = #tpu.core_type<tc>, window_params = [{transform_indices = @transform_0, window_bounds = array<i64: 8, 4>}, {pipeline_mode = #tpu.pipeline_mode<synchronous>, transform_indices = @transform_1, window_bounds = array<i64: 4, 128>}, {pipeline_mode = #tpu.pipeline_mode<synchronous>, transform_indices = @transform_2, window_bounds = array<i64: 128, 128>}, {transform_indices = @transform_3, window_bounds = array<i64: 8, 128>}]} {
    %c0 = arith.constant 0 : index
    %c0_0 = arith.constant 0 : index
    %0 = vector.load %arg1[%c0, %c0_0] : memref<8x4xf32, #tpu.memory_space<vmem>>, vector<8x4xf32>
    %c0_1 = arith.constant 0 : index
    %c0_2 = arith.constant 0 : index
    %1 = vector.load %arg2[%c0_1, %c0_2] : memref<4x128xf32, #tpu.memory_space<vmem>>, vector<4x128xf32>
    %cst = arith.constant dense<0.000000e+00> : vector<8x128xf32>
    %2 = tpu.matmul %0, %1, %cst {dimension_numbers = #tpu.dot_dimension_numbers<[1], [0], [0], [1], [0, 0, 1, 1], [], []>} : vector<8x4xf32>, vector<4x128xf32>, vector<8x128xf32> -> vector<8x128xf32>
    %cst_3 = arith.constant 0.000000e+00 : f32
    %3 = vector.broadcast %cst_3 : f32 to vector<8x128xf32>
    %4 = arith.maximumf %2, %3 : vector<8x128xf32>
    %c0_4 = arith.constant 0 : index
    %c0_5 = arith.constant 0 : index
    %5 = vector.load %arg3[%c0_4, %c0_5] : memref<128x128xf32, #tpu.memory_space<vmem>>, vector<128x128xf32>
    %cst_6 = arith.constant dense<0.000000e+00> : vector<8x128xf32>
    %6 = tpu.matmul %4, %5, %cst_6 {dimension_numbers = #tpu.dot_dimension_numbers<[1], [0], [0], [1], [0, 0, 1, 1], [], []>} : vector<8x128xf32>, vector<128x128xf32>, vector<8x128xf32> -> vector<8x128xf32>
    %7 = tpu.iota {dimensions = array<i32: 1>} : vector<8x128xi32>
    %c2_i32 = arith.constant 2 : i32
    %8 = vector.broadcast %c2_i32 : i32 to vector<8x128xi32>
    %9 = arith.cmpi slt, %7, %8 : vector<8x128xi32>
    %cst_7 = arith.constant 0xFF800000 : f32
    %10 = vector.broadcast %cst_7 : f32 to vector<8x128xf32>
    %11 = arith.select %9, %6, %10 : vector<8x128xi1>, vector<8x128xf32>
    %cst_8 = arith.constant dense<0xFF800000> : vector<8xf32>
    %12 = vector.multi_reduction <maximumf>, %11, %cst_8 [1] : vector<8x128xf32> to vector<8xf32>
    %13 = vector.shape_cast %12 : vector<8xf32> to vector<8x1xf32>
    %14 = vector.broadcast %13 : vector<8x1xf32> to vector<8x128xf32>
    %15 = arith.subf %11, %14 : vector<8x128xf32>
    %16 = math.exp %15 : vector<8x128xf32>
    %cst_9 = arith.constant dense<0.000000e+00> : vector<8xf32>
    %17 = vector.multi_reduction <add>, %16, %cst_9 [1] : vector<8x128xf32> to vector<8xf32>
    %18 = vector.shape_cast %17 : vector<8xf32> to vector<8x1xf32>
    %19 = vector.broadcast %18 : vector<8x1xf32> to vector<8x128xf32>
    %20 = arith.divf %16, %19 : vector<8x128xf32>
    %c0_10 = arith.constant 0 : index
    %c0_11 = arith.constant 0 : index
    %21 = vector.load %arg4[%c0_10, %c0_11] : memref<8x128xf32, #tpu.memory_space<vmem>>, vector<8x128xf32>
    tpu.vector_store %arg4[%c0_10, %c0_11], %20 {strides = array<i32>} : memref<8x128xf32, #tpu.memory_space<vmem>>, vector<8x128xf32>,
    return
  }
  func.func @transform_0(%arg0: i32) -> (i32, i32) {
    %c0_i32 = arith.constant 0 : i32
    %c0_i32_0 = arith.constant 0 : i32
    return %arg0, %c0_i32 : i32, i32
  }
  func.func @transform_1(%arg0: i32) -> (i32, i32) {
    %c0_i32 = arith.constant 0 : i32
    %c0_i32_0 = arith.constant 0 : i32
    %c0_i32_1 = arith.constant 0 : i32
    return %c0_i32, %c0_i32_0 : i32, i32
  }
  func.func @transform_2(%arg0: i32) -> (i32, i32) {
    %c0_i32 = arith.constant 0 : i32
    %c0_i32_0 = arith.constant 0 : i32
    %c0_i32_1 = arith.constant 0 : i32
    return %c0_i32, %c0_i32_0 : i32, i32
  }
  func.func @transform_3(%arg0: i32) -> (i32, i32) {
    %c0_i32 = arith.constant 0 : i32
    %c0_i32_0 = arith.constant 0 : i32
    return %arg0, %c0_i32 : i32, i32
  }
}

</mosaic_0001>

<llo_original>
// kernel: tpu_custom_call.1
$region0: #{tpu_custom_call.1}
  #allocation0 [shape = 'u32[]', space=smem, size = 0x4, offset = 0x4, fixed_abs, tag = 'smem constant byte address 0x4 - core index']
  #allocation1 [shape = 'u32[144,128]{1,0:T(1,128)}', space=vmem, size = 0x12000, scoped, tag = 'internal scratch']
  %s0 = inlined_call_operand.vmem [shape: f32[8,4], index: 0, kind: input, shape index: {}]
  %s1 = inlined_call_operand.vmem [shape: f32[4,128], index: 1, kind: input, shape index: {}]
  %s2 = inlined_call_operand.hbm [shape: f32[128,128], index: 2, kind: input, shape index: {}]
  %s3 = inlined_call_operand.hbm [shape: f32[8,128], index: 3, kind: output, shape index: {}]
  %s4 = sld [smem:[#allocation0]]
  $region26: #{tpu_custom_call.1} parent=0
    _
  %s6 = ssub.s32 1, %s4
  %s7 = scalar_select 0, %s6, %s4
  $region1: #{tpu_custom_call.1} parent=0
    #allocation2 [shape = 'u8[65536]{0}', space=vmem, size = 0x10000, scoped, tag = 'input window, operand 2, single buffered']
    #allocation3 [shape = 's32[1]{0}', space=sflag, size = 0x4, scoped, tag = 'scoped memory for tpu_custom_call.1']
    #allocation4 [shape = 's32[1]{0}', space=sflag, size = 0x4, scoped, tag = 'scoped memory for tpu_custom_call.1']
    #allocation5 [shape = 'u8[4096]{0}', space=vmem, size = 0x1000, scoped, tag = 'output window, operand 0, single buffered']
    %8 = vsyncpa [#allocation3], 0
    %9 = vsyncpa [#allocation4], 0
    // Predicated region
    $region2: #{tpu_custom_call.1} parent=1 // pred_check
      _
    $region3: #{tpu_custom_call.1} parent=1 // pred_check_branch
      %11 = sbr.rel (0) target = $region5
    $region4: #{tpu_custom_call.1} parent=1 // pred_region
      _
    $region5: #{tpu_custom_call.1} parent=1 // pred_fallthru
      _
    // Predicated region
    $region6: #{tpu_custom_call.1} parent=1 // pred_check
      _
    $region7: #{tpu_custom_call.1} parent=1 // pred_check_branch
      %13 = sbr.rel (0) target = $region9
    $region8: #{tpu_custom_call.1} parent=1 // pred_region
      _
    $region9: #{tpu_custom_call.1} parent=1 // pred_fallthru
      _
    // Predicated region
    $region10: #{tpu_custom_call.1} parent=1 // pred_check
      _
    $region11: #{tpu_custom_call.1} parent=1 // pred_check_branch
      %15 = sbr.rel (0) target = $region13
    $region12: #{tpu_custom_call.1} parent=1 // pred_region
      %s17 = ssub.s32 2048, 2048
      %18 = vsyncadd [#allocation3], %s17
      %s19 = sshll.u32 [#allocation2], 4
      %s20 = int_to_ptr.vmem [resolvable:$true] %s19
      %25 = dma.hbm_to_vmem [thread:$0]  %s2, 2048, %s20, [#allocation3], 128, 128, 8
    $region13: #{tpu_custom_call.1} parent=1 // pred_fallthru
      _
    // Predicated region
    $region14: #{tpu_custom_call.1} parent=1 // pred_check
      _
    $region15: #{tpu_custom_call.1} parent=1 // pred_check_branch
      %27 = sbr.rel (0) target = $region17
    $region16: #{tpu_custom_call.1} parent=1 // pred_region
      %28 = dma.done [#allocation3], 2048
    $region17: #{tpu_custom_call.1} parent=1 // pred_fallthru
      _
    %v29 = vld [vmem:[%s0] sm:$0xff]
    %v30 = vld [vmem:[%s1] sm:$0xf]
    %vm31 = vcmask 31744
    %v33 = vsel %vm31, %v29, 0
    %vm35 = vcmask 1043456
    %v37 = vsel %vm35, %v30, 0
    %39 = vmatprep.subr.mxu0 0.0
    %40 = vmatpush1.msra.mxu0 %v37
    %41 = vmatprep.subr.mxu0 0.0
    %42 = vmatpush1.msra.mxu0 0.0
    %43 = vmatprep.subr.mxu0 0.0
    %44 = vmatpush1.msra.mxu0 0.0
    %45 = vmatprep.subr.mxu0 0.0
    %46 = vmatpush1.msra.mxu0 0.0
    %47 = vmatprep.subr.mxu0 0.0
    %48 = vmatpush1.msra.mxu0 0.0
    %49 = vmatprep.subr.mxu0 0.0
    %50 = vmatpush1.msra.mxu0 0.0
    %51 = vmatprep.subr.mxu0 0.0
    %52 = vmatpush1.msra.mxu0 0.0
    %53 = vmatprep.subr.mxu0 0.0
    %54 = vmatpush1.msra.mxu0 0.0
    %55 = vmatprep.subr.mxu0 0.0
    %56 = vmatpush1.msra.mxu0 0.0
    %57 = vmatprep.subr.mxu0 0.0
    %58 = vmatpush1.msra.mxu0 0.0
    %59 = vmatprep.subr.mxu0 0.0
    %60 = vmatpush1.msra.mxu0 0.0
    %61 = vmatprep.subr.mxu0 0.0
    %62 = vmatpush1.msra.mxu0 0.0
    %63 = vmatprep.subr.mxu0 0.0
    %64 = vmatpush1.msra.mxu0 0.0
    %65 = vmatprep.subr.mxu0 0.0
    %66 = vmatpush1.msra.mxu0 0.0
    %67 = vmatprep.subr.mxu0 0.0
    %68 = vmatpush1.msra.mxu0 0.0
    %69 = vmatprep.subr.mxu0 0.0
    %70 = vmatpush1.msra.mxu0 0.0
    %71 = vmatprep.subr.mxu0 0.0
    %72 = vmatpush1.msra.mxu0 0.0
    %73 = vmatprep.subr.mxu0 0.0
    %74 = vmatpush1.msra.mxu0 0.0
    %75 = vmatprep.subr.mxu0 0.0
    %76 = vmatpush1.msra.mxu0 0.0
    %77 = vmatprep.subr.mxu0 0.0
    %78 = vmatpush1.msra.mxu0 0.0
    %79 = vmatprep.subr.mxu0 0.0
    %80 = vmatpush1.msra.mxu0 0.0
    %81 = vmatprep.subr.mxu0 0.0
    %82 = vmatpush1.msra.mxu0 0.0
    %83 = vmatprep.subr.mxu0 0.0
    %84 = vmatpush1.msra.mxu0 0.0
    %85 = vmatprep.subr.mxu0 0.0
    %86 = vmatpush1.msra.mxu0 0.0
    %87 = vmatprep.subr.mxu0 0.0
    %88 = vmatpush1.msra.mxu0 0.0
    %89 = vmatprep.subr.mxu0 0.0
    %90 = vmatpush1.msra.mxu0 0.0
    %91 = vmatprep.subr.mxu0 0.0
    %92 = vmatpush1.msra.mxu0 0.0
    %93 = vmatprep.subr.mxu0 0.0
    %94 = vmatpush1.msra.mxu0 0.0
    %95 = vmatprep.subr.mxu0 0.0
    %96 = vmatpush1.msra.mxu0 0.0
    %97 = vmatprep.subr.mxu0 0.0
    %98 = vmatpush1.msra.mxu0 0.0
    %99 = vmatprep.subr.mxu0 0.0
    %100 = vmatpush1.msra.mxu0 0.0
    %101 = vmatprep.subr.mxu0 0.0
    %102 = vmatpush1.msra.mxu0 0.0
    %103 = vmatprep.mubr.f32.mxu0 0.0
    %104 = vmatmul.mubr.f32.gmra.mrb[0].mxu0 %v33
    %v105 = vpop.f32.mrb[0].mxu0
    %v106 = vadd.f32 0.0, %v105
    %v107 = vpop.f32.mrb[0].mxu0
    %108 = vdwg.mxu0
    %v109 = vmax.f32 %v106, 0.0
    %v110 = vld [vmem:[#allocation2] sm:$0xff]
    %v111 = vld [vmem:[#allocation2 + $0x8] sm:$0xff]
    %v112 = vld [vmem:[#allocation2 + $0x10] sm:$0xff]
    %v113 = vld [vmem:[#allocation2 + $0x18] sm:$0xff]
    %v114 = vld [vmem:[#allocation2 + $0x20] sm:$0xff]
    %v115 = vld [vmem:[#allocation2 + $0x28] sm:$0xff]
    %v116 = vld [vmem:[#allocation2 + $0x30] sm:$0xff]
    %v117 = vld [vmem:[#allocation2 + $0x38] sm:$0xff]
    %v118 = vld [vmem:[#allocation2 + $0x40] sm:$0xff]
    %v119 = vld [vmem:[#allocation2 + $0x48] sm:$0xff]
    %v120 = vld [vmem:[#allocation2 + $0x50] sm:$0xff]
    %v121 = vld [vmem:[#allocation2 + $0x58] sm:$0xff]
    %v122 = vld [vmem:[#allocation2 + $0x60] sm:$0xff]
    %v123 = vld [vmem:[#allocation2 + $0x68] sm:$0xff]
    %v124 = vld [vmem:[#allocation2 + $0x70] sm:$0xff]
    %v125 = vld [vmem:[#allocation2 + $0x78] sm:$0xff]
    %126 = vmatprep.subr.mxu0 0.0
    %127 = vmatpush1.msra.mxu0 %v110
    %128 = vmatprep.subr.mxu0 0.0
    %129 = vmatpush1.msra.mxu0 %v111
    %130 = vmatprep.subr.mxu0 0.0
    %131 = vmatpush1.msra.mxu0 %v112
    %132 = vmatprep.subr.mxu0 0.0
    %133 = vmatpush1.msra.mxu0 %v113
    %134 = vmatprep.subr.mxu0 0.0
    %135 = vmatpush1.msra.mxu0 %v114
    %136 = vmatprep.subr.mxu0 0.0
    %137 = vmatpush1.msra.mxu0 %v115
    %138 = vmatprep.subr.mxu0 0.0
    %139 = vmatpush1.msra.mxu0 %v116
    %140 = vmatprep.subr.mxu0 0.0
    %141 = vmatpush1.msra.mxu0 %v117
    %142 = vmatprep.subr.mxu0 0.0
    %143 = vmatpush1.msra.mxu0 %v118
    %144 = vmatprep.subr.mxu0 0.0
    %145 = vmatpush1.msra.mxu0 %v119
    %146 = vmatprep.subr.mxu0 0.0
    %147 = vmatpush1.msra.mxu0 %v120
    %148 = vmatprep.subr.mxu0 0.0
    %149 = vmatpush1.msra.mxu0 %v121
    %150 = vmatprep.subr.mxu0 0.0
    %151 = vmatpush1.msra.mxu0 %v122
    %152 = vmatprep.subr.mxu0 0.0
    %153 = vmatpush1.msra.mxu0 %v123
    %154 = vmatprep.subr.mxu0 0.0
    %155 = vmatpush1.msra.mxu0 %v124
    %156 = vmatprep.subr.mxu0 0.0
    %157 = vmatpush1.msra.mxu0 %v125
    %158 = vmatprep.subr.mxu0 0.0
    %159 = vmatpush1.msra.mxu0 0.0
    %160 = vmatprep.subr.mxu0 0.0
    %161 = vmatpush1.msra.mxu0 0.0
    %162 = vmatprep.subr.mxu0 0.0
    %163 = vmatpush1.msra.mxu0 0.0
    %164 = vmatprep.subr.mxu0 0.0
    %165 = vmatpush1.msra.mxu0 0.0
    %166 = vmatprep.subr.mxu0 0.0
    %167 = vmatpush1.msra.mxu0 0.0
    %168 = vmatprep.subr.mxu0 0.0
    %169 = vmatpush1.msra.mxu0 0.0
    %170 = vmatprep.subr.mxu0 0.0
    %171 = vmatpush1.msra.mxu0 0.0
    %172 = vmatprep.subr.mxu0 0.0
    %173 = vmatpush1.msra.mxu0 0.0
    %174 = vmatprep.subr.mxu0 0.0
    %175 = vmatpush1.msra.mxu0 0.0
    %176 = vmatprep.subr.mxu0 0.0
    %177 = vmatpush1.msra.mxu0 0.0
    %178 = vmatprep.subr.mxu0 0.0
    %179 = vmatpush1.msra.mxu0 0.0
    %180 = vmatprep.subr.mxu0 0.0
    %181 = vmatpush1.msra.mxu0 0.0
    %182 = vmatprep.subr.mxu0 0.0
    %183 = vmatpush1.msra.mxu0 0.0
    %184 = vmatprep.subr.mxu0 0.0
    %185 = vmatpush1.msra.mxu0 0.0
    %186 = vmatprep.subr.mxu0 0.0
    %187 = vmatpush1.msra.mxu0 0.0
    %188 = vmatprep.subr.mxu0 0.0
    %189 = vmatpush1.msra.mxu0 0.0
    %190 = vmatprep.mubr.f32.mxu0 0.0
    %191 = vmatmul.mubr.f32.gmra.mrb[0].mxu0 %v109
    %v192 = vpop.f32.mrb[0].mxu0
    %v193 = vadd.f32 0.0, %v192
    %v194 = vpop.f32.mrb[0].mxu0
    %195 = vdwg.mxu0
    %v196 = vlaneseq
    %v197 = vand.u32 %v196, 127
    %vm198 = vcmp.lt.s32.totalorder %v197, 2
    %v199 = vsel %vm198, %v193, -inf
    %200 = vmax.xlane.f32.xlu0 %v199
    %v201 = vpop.xlane.xlu0 %200
    %v202 = vsub.f32 %v199, %v201
    %v203 = vmul.f32 %v202, 1.442695
    %v204 = vpow.pop %v203
    %205 = vadd.xlane.f32.xlu0 %v204
    %v206 = vpop.xlane.xlu0 %205
    %v207 = vrcp.pop %v206
    %v208 = vmul.f32 %v204, %v207
    %209 = vst [vmem:[#allocation5] sm:$0xff] %v208
    // Predicated region
    $region18: #{tpu_custom_call.1} parent=1 // pred_check
      _
    $region19: #{tpu_custom_call.1} parent=1 // pred_check_branch
      %211 = sbr.rel (0) target = $region21
    $region20: #{tpu_custom_call.1} parent=1 // pred_region
      %s213 = ssub.s32 128, 128
      %214 = vsyncadd [#allocation4], %s213
      %s216 = sshll.u32 [#allocation5], 4
      %s217 = int_to_ptr.vmem [resolvable:$true] %s216
      %219 = dma.vmem_to_hbm [thread:$0]  %s217, 128, %s3, [#allocation4]
    $region21: #{tpu_custom_call.1} parent=1 // pred_fallthru
      _
    // Predicated region
    $region22: #{tpu_custom_call.1} parent=1 // pred_check
      _
    $region23: #{tpu_custom_call.1} parent=1 // pred_check_branch
      %221 = sbr.rel (0) target = $region25
    $region24: #{tpu_custom_call.1} parent=1 // pred_region
      %222 = dma.done [#allocation4], 128
    $region25: #{tpu_custom_call.1} parent=1 // pred_fallthru
      _
    %223 = vsyncpa [#allocation3], 1
    %224 = vsyncpa [#allocation4], 1

</llo_original>
